<compile_context>
chip_gen: v7x
topology: tpu7x:2x2x1
jax: 0.10.0
libtpu: 0.0.40
codegen_flags: <defaults>
</compile_context>

<pallas_src>
import functools

import jax
import jax.numpy as jnp
from jax.experimental import pallas as pl
from jax.experimental.pallas import tpu as pltpu


def _energy_loss_kernel(out_ref, tgt_ref, partial_ref, *, margin, total_b):
    """One batch tile: per-sample hinge losses -> per-tile partial-loss sum.

    out_ref:     (TB, C) float  VMEM tile of raw energies
    tgt_ref:     (TB, 1) int32  VMEM tile of target class indices
    partial_ref: (1, 8, 128) f32 output block; the tile's partial sum is
                 broadcast across the block so the store is a full, unmasked,
                 lane-dense vst. The wrapper reads lane [0, 0] per tile.
    """
    x = out_ref[...].astype(jnp.float32)                 # (TB, C)
    t = tgt_ref[...]                                     # (TB, 1) int32
    tb, c = x.shape

    # Mask out remainder rows of the last (padded) batch tile.
    row_ids = pl.program_id(0) * tb + jax.lax.broadcasted_iota(
        jnp.int32, (tb, 1), 0)
    valid = row_ids < total_b                            # (TB, 1)

    # Row sums of the *raw* energies (normalization is deferred, see below).
    row_sum = jnp.sum(x, axis=1, keepdims=True) + 1e-6   # (TB, 1)

    col_ids = jax.lax.broadcasted_iota(jnp.int32, (tb, c), 1)
    is_target = col_ids == t                             # (TB, C)

    # target_energy (pre-normalization): outputs[i, targets[i]]
    te_raw = jnp.sum(jnp.where(is_target, x, 0.0), axis=1, keepdims=True)
    # non_target_energy: PyTorch multiplies by a 0/1 mask then takes max, so
    # the target slot contributes 0 (not -inf) -- reproduce that exactly.
    nte_raw = jnp.max(jnp.where(is_target, 0.0, x), axis=1, keepdims=True)

    # Deferred normalization: scale the two (TB, 1) reductions instead of
    # dividing the whole (TB, C) tile.  Valid because row_sum + 1e-6 > 0 for
    # the module's intended positive (softplus-style) energies; the exact
    # reciprocal keeps numerical parity with the PyTorch reference.
    inv = 1.0 / row_sum
    per_sample = jnp.maximum(margin - (te_raw - nte_raw) * inv, 0.0)
    per_sample = jnp.where(valid, per_sample, 0.0)       # zero padded rows

    tile_sum = jnp.sum(per_sample)
    partial_ref[...] = jnp.full(partial_ref.shape, tile_sum, jnp.float32)


def _choose_batch_tile(b, c, itemsize):
    """Batch-tile size: ~2 MiB per input buffer so double-buffered inputs sit
    well inside the scoped VMEM limit on every TPU generation (v5e 16 MiB
    default scoped, v6e 32 MiB, v7x 64 MiB physical)."""
    budget = 2 * 1024 * 1024
    rows = budget // max(1, c * itemsize)
    rows = max(8, min(int(rows), 1024))
    rows = (rows // 8) * 8                  # sublane-aligned
    b_pad = ((b + 7) // 8) * 8              # don't exceed (padded) batch
    return max(8, min(rows, b_pad))


def energy_maximization_loss(outputs, targets, margin=0.5):
    """Pallas TPU implementation of EnergyMaximizationLoss.forward."""
    b, c = outputs.shape
    tgt2 = targets.astype(jnp.int32).reshape(b, 1)

    itemsize = jnp.dtype(outputs.dtype).itemsize
    tb = _choose_batch_tile(b, c, itemsize)
    num_tiles = pl.cdiv(b, tb)

    # TODO(synk): for very large C add an inner "arbitrary" grid axis over C
    # with running sum/max scratch instead of shrinking the batch tile.
    partials = pl.pallas_call(
        functools.partial(_energy_loss_kernel, margin=float(margin), total_b=b),
        out_shape=jax.ShapeDtypeStruct((num_tiles, 8, 128), jnp.float32),
        grid=(num_tiles,),
        in_specs=[
            pl.BlockSpec((tb, c), lambda i: (i, 0)),
            pl.BlockSpec((tb, 1), lambda i: (i, 0)),
        ],
        out_specs=pl.BlockSpec((1, 8, 128), lambda i: (i, 0, 0)),
        compiler_params=pltpu.CompilerParams(
            dimension_semantics=("parallel",),        # megacore-shardable
            vmem_limit_bytes=32 * 1024 * 1024,
        ),
        cost_estimate=pl.CostEstimate(
            flops=6 * b * c,
            transcendentals=0,
            bytes_accessed=b * c * itemsize + b * 4 + num_tiles * 8 * 128 * 4,
        ),
    )(outputs, tgt2)

    # Per-tile partial sums -> mean over the *true* batch size.
    return jnp.sum(partials[:, 0, 0]) / b


def _reference_loss(outputs, targets, margin=0.5):
    # Pure-JAX reference mirroring the PyTorch module, for a sanity check.
    b = outputs.shape[0]
    xn = outputs / (jnp.sum(outputs, axis=1, keepdims=True) + 1e-6)
    te = xn[jnp.arange(b), targets]
    mask = jnp.ones_like(xn).at[jnp.arange(b), targets].set(0.0)
    nte = jnp.max(xn * mask, axis=1)
    return jnp.mean(jnp.maximum(margin - te + nte, 0.0))


if __name__ == "__main__":
    key = jax.random.PRNGKey(0)
    k_out, k_tgt = jax.random.split(key)

    B, C = 8, 16
    # Positive "energies" (e.g. post-softplus scores), batch of 8, 16 classes.
    outputs = jax.random.uniform(k_out, (B, C), dtype=jnp.float32,
                                 minval=0.05, maxval=1.0)
    targets = jax.random.randint(k_tgt, (B,), 0, C, dtype=jnp.int32)

    loss = energy_maximization_loss(outputs, targets, margin=0.5)
    loss = jax.block_until_ready(loss)

    ref = jax.block_until_ready(_reference_loss(outputs, targets, margin=0.5))
    assert jnp.allclose(loss, ref, atol=1e-5, rtol=1e-5), (loss, ref)

    print("KERNEL_OK")
</pallas_src>

<mosaic_0001>
module attributes {stable_mosaic.version = 11 : i64} {
  func.func @_energy_loss_kernel(%arg0: i32, %arg1: memref<8x16xf32, #tpu.memory_space<vmem>>, %arg2: memref<8x1xi32, #tpu.memory_space<vmem>>, %arg3: memref<1x8x128xf32, #tpu.memory_space<vmem>>) attributes {dimension_semantics = [#tpu.dimension_semantics<parallel>], iteration_bounds = array<i64: 1>, scalar_prefetch = 0 : i64, scratch_operands = 0 : i64, tpu.core_type = #tpu.core_type<tc>, window_params = [{transform_indices = @transform_0, window_bounds = array<i64: 8, 16>}, {transform_indices = @transform_1, window_bounds = array<i64: 8, 1>}, {transform_indices = @transform_2, window_bounds = array<i64: 1, 8, 128>}]} {
    %c0 = arith.constant 0 : index
    %c0_0 = arith.constant 0 : index
    %0 = vector.load %arg1[%c0, %c0_0] : memref<8x16xf32, #tpu.memory_space<vmem>>, vector<8x16xf32>
    %c0_1 = arith.constant 0 : index
    %c0_2 = arith.constant 0 : index
    %1 = vector.load %arg2[%c0_1, %c0_2] : memref<8x1xi32, #tpu.memory_space<vmem>>, vector<8x1xi32>
    %c8_i32 = arith.constant 8 : i32
    %2 = arith.muli %arg0, %c8_i32 : i32
    %3 = tpu.iota {dimensions = array<i32: 0>} : vector<8x1xi32>
    %4 = vector.broadcast %2 : i32 to vector<8x1xi32>
    %5 = arith.addi %4, %3 : vector<8x1xi32>
    %c8_i32_3 = arith.constant 8 : i32
    %6 = vector.broadcast %c8_i32_3 : i32 to vector<8x1xi32>
    %7 = arith.cmpi slt, %5, %6 : vector<8x1xi32>
    %cst = arith.constant dense<0.000000e+00> : vector<8xf32>
    %8 = vector.multi_reduction <add>, %0, %cst [1] : vector<8x16xf32> to vector<8xf32>
    %9 = vector.shape_cast %8 : vector<8xf32> to vector<8x1xf32>
    %cst_4 = arith.constant 9.99999997E-7 : f32
    %10 = vector.broadcast %cst_4 : f32 to vector<8x1xf32>
    %11 = arith.addf %9, %10 : vector<8x1xf32>
    %12 = tpu.iota {dimensions = array<i32: 1>} : vector<8x16xi32>
    %13 = vector.broadcast %1 : vector<8x1xi32> to vector<8x16xi32>
    %14 = arith.cmpi eq, %12, %13 : vector<8x16xi32>
    %cst_5 = arith.constant 0.000000e+00 : f32
    %15 = vector.broadcast %cst_5 : f32 to vector<8x16xf32>
    %16 = arith.select %14, %0, %15 : vector<8x16xi1>, vector<8x16xf32>
    %cst_6 = arith.constant dense<0.000000e+00> : vector<8xf32>
    %17 = vector.multi_reduction <add>, %16, %cst_6 [1] : vector<8x16xf32> to vector<8xf32>
    %18 = vector.shape_cast %17 : vector<8xf32> to vector<8x1xf32>
    %cst_7 = arith.constant 0.000000e+00 : f32
    %19 = vector.broadcast %cst_7 : f32 to vector<8x16xf32>
    %20 = arith.select %14, %19, %0 : vector<8x16xi1>, vector<8x16xf32>
    %cst_8 = arith.constant dense<0xFF800000> : vector<8xf32>
    %21 = vector.multi_reduction <maximumf>, %20, %cst_8 [1] : vector<8x16xf32> to vector<8xf32>
    %22 = vector.shape_cast %21 : vector<8xf32> to vector<8x1xf32>
    %cst_9 = arith.constant 1.000000e+00 : f32
    %23 = vector.broadcast %cst_9 : f32 to vector<8x1xf32>
    %24 = arith.divf %23, %11 : vector<8x1xf32>
    %25 = arith.subf %18, %22 : vector<8x1xf32>
    %26 = arith.mulf %25, %24 : vector<8x1xf32>
    %cst_10 = arith.constant 5.000000e-01 : f32
    %27 = vector.broadcast %cst_10 : f32 to vector<8x1xf32>
    %28 = arith.subf %27, %26 : vector<8x1xf32>
    %cst_11 = arith.constant 0.000000e+00 : f32
    %29 = vector.broadcast %cst_11 : f32 to vector<8x1xf32>
    %30 = arith.maximumf %28, %29 : vector<8x1xf32>
    %cst_12 = arith.constant 0.000000e+00 : f32
    %31 = vector.broadcast %cst_12 : f32 to vector<8x1xf32>
    %32 = arith.select %7, %30, %31 : vector<8x1xi1>, vector<8x1xf32>
    %33 = vector.shape_cast %32 : vector<8x1xf32> to vector<1x8x1xf32>
    %cst_13 = arith.constant dense<0.000000e+00> : vector<1xf32>
    %34 = vector.multi_reduction <add>, %33, %cst_13 [1, 2] : vector<1x8x1xf32> to vector<1xf32>
    %35 = vector.shape_cast %34 : vector<1xf32> to vector<1x1x1xf32>
    %36 = vector.extract %35[0, 0, 0] : f32 from vector<1x1x1xf32>
    %37 = vector.broadcast %36 : f32 to vector<1x8x128xf32>
    %c0_14 = arith.constant 0 : index
    %c0_15 = arith.constant 0 : index
    %c0_16 = arith.constant 0 : index
    %38 = vector.load %arg3[%c0_14, %c0_15, %c0_16] : memref<1x8x128xf32, #tpu.memory_space<vmem>>, vector<1x8x128xf32>
    tpu.vector_store %arg3[%c0_14, %c0_15, %c0_16], %37 {strides = array<i32>} : memref<1x8x128xf32, #tpu.memory_space<vmem>>, vector<1x8x128xf32>,
    return
  }
  func.func @transform_0(%arg0: i32) -> (i32, i32) {
    %c0_i32 = arith.constant 0 : i32
    %c0_i32_0 = arith.constant 0 : i32
    return %arg0, %c0_i32 : i32, i32
  }
  func.func @transform_1(%arg0: i32) -> (i32, i32) {
    %c0_i32 = arith.constant 0 : i32
    %c0_i32_0 = arith.constant 0 : i32
    return %arg0, %c0_i32 : i32, i32
  }
  func.func @transform_2(%arg0: i32) -> (i32, i32, i32) {
    %c0_i32 = arith.constant 0 : i32
    %c0_i32_0 = arith.constant 0 : i32
    %c0_i32_1 = arith.constant 0 : i32
    return %arg0, %c0_i32, %c0_i32_0 : i32, i32, i32
  }
}

</mosaic_0001>

<llo_original>
// kernel: tpu_custom_call.1
$region0: #{tpu_custom_call.1}
  #allocation0 [shape = 'u32[]', space=smem, size = 0x4, offset = 0x4, fixed_abs, tag = 'smem constant byte address 0x4 - core index']
  #allocation1 [shape = 'u32[144,128]{1,0:T(1,128)}', space=vmem, size = 0x12000, scoped, tag = 'internal scratch']
  %s0 = inlined_call_operand.vmem [shape: f32[8,16], index: 0, kind: input, shape index: {}]
  %s1 = inlined_call_operand.vmem [shape: s32[8,1], index: 1, kind: input, shape index: {}]
  %s2 = inlined_call_operand.hbm [shape: f32[1,8,128], index: 2, kind: output, shape index: {}]
  %s3 = sld [smem:[#allocation0]]
  $region18: #{tpu_custom_call.1} parent=0
    _
  %s5 = ssub.s32 1, %s3
  %s6 = scalar_select 0, %s5, %s3
  $region1: #{tpu_custom_call.1} parent=0
    #allocation2 [shape = 'u8[4096]{0}', space=vmem, size = 0x1000, scoped, tag = 'output window, operand 0, single buffered']
    #allocation3 [shape = 's32[1]{0}', space=sflag, size = 0x4, scoped, tag = 'scoped memory for tpu_custom_call.1']
    %7 = vsyncpa [#allocation3], 0
    // Predicated region
    $region2: #{tpu_custom_call.1} parent=1 // pred_check
      _
    $region3: #{tpu_custom_call.1} parent=1 // pred_check_branch
      %9 = sbr.rel (0) target = $region5
    $region4: #{tpu_custom_call.1} parent=1 // pred_region
      _
    $region5: #{tpu_custom_call.1} parent=1 // pred_fallthru
      _
    // Predicated region
    $region6: #{tpu_custom_call.1} parent=1 // pred_check
      _
    $region7: #{tpu_custom_call.1} parent=1 // pred_check_branch
      %11 = sbr.rel (0) target = $region9
    $region8: #{tpu_custom_call.1} parent=1 // pred_region
      _
    $region9: #{tpu_custom_call.1} parent=1 // pred_fallthru
      _
    %v12 = vld [vmem:[%s0] sm:$0xff]
    %v13 = vld [vmem:[%s1] sm:$0xff]
    %s14 = smul.u32 0, 8
    %v15 = vlaneseq
    %v16 = vshrl.u32 %v15, 7
    %v17 = vstv %s14
    %v18 = vadd.s32 %v17, %v16
    %vm19 = vcmp.lt.s32.totalorder %v18, 8
    %vm20 = vcmask 130048
    %v21 = vsel %vm20, %v12, 0.0
    %22 = vadd.xlane.f32.xlu0 %v21
    %v23 = vpop.xlane.xlu0 %22
    %v24 = vadd.f32 %v23, 1e-06
    %v25 = vlaneseq
    %v26 = vand.u32 %v25, 127
    %27 = vset.pattern.permute.xlu0 0
    %28 = vperm.xlu0 %27, %v13
    %v29 = vpop.permute.xlu0 %28
    %vm30 = vcmp.eq.s32.totalorder %v26, %v29
    %v31 = vsel %vm30, %v12, 0.0
    %v32 = vsel %vm20, %v31, 0.0
    %33 = vadd.xlane.f32.xlu0 %v32
    %v34 = vpop.xlane.xlu0 %33
    %v35 = vsel %vm30, 0.0, %v12
    %v36 = vsel %vm20, %v35, -inf
    %37 = vmax.xlane.f32.xlu0 %v36
    %v38 = vpop.xlane.xlu0 %37
    %v39 = vrcp.pop %v24
    %v40 = vmul.f32 1.0, %v39
    %v41 = vsub.f32 %v34, %v38
    %v42 = vmul.f32 %v41, %v40
    %v43 = vsub.f32 0.5, %v42
    %v44 = vmax.f32 %v43, 0.0
    %v45 = vsel %vm19, %v44, 0.0
    %vm46 = vcmask 7168
    %v47 = vsel %vm46, %v45, 0.0
    %48 = vadd.xlane.f32.xlu0 %v47
    %v49 = vpop.xlane.xlu0 %48
    %v50 = vrot.slane %v49, 4
    %v51 = vadd.f32 %v49, %v50
    %v52 = vrot.slane %v51, 2
    %v53 = vadd.f32 %v51, %v52
    %v54 = vrot.slane %v53, 1
    %v55 = vadd.f32 %v53, %v54
    %s56 = vtos %v55
    %v57 = vstv %s56
    %58 = vst [vmem:[#allocation2] sm:$0xff] %v57
    // Predicated region
    $region10: #{tpu_custom_call.1} parent=1 // pred_check
      _
    $region11: #{tpu_custom_call.1} parent=1 // pred_check_branch
      %60 = sbr.rel (0) target = $region13
    $region12: #{tpu_custom_call.1} parent=1 // pred_region
      %s62 = ssub.s32 128, 128
      %63 = vsyncadd [#allocation3], %s62
      %s65 = sshll.u32 [#allocation2], 4
      %s66 = int_to_ptr.vmem [resolvable:$true] %s65
      %68 = dma.vmem_to_hbm [thread:$0]  %s66, 128, %s2, [#allocation3]
    $region13: #{tpu_custom_call.1} parent=1 // pred_fallthru
      _
    // Predicated region
    $region14: #{tpu_custom_call.1} parent=1 // pred_check
      _
    $region15: #{tpu_custom_call.1} parent=1 // pred_check_branch
      %70 = sbr.rel (0) target = $region17
    $region16: #{tpu_custom_call.1} parent=1 // pred_region
      %71 = dma.done [#allocation3], 128
    $region17: #{tpu_custom_call.1} parent=1 // pred_fallthru
      _
    %72 = vsyncpa [#allocation3], 1

</llo_original>
